<compile_context>
chip_gen: v7x
topology: tpu7x:2x2x1
jax: 0.10.0
libtpu: 0.0.40
codegen_flags: <defaults>
</compile_context>

<pallas_src>
import functools

import jax
import jax.numpy as jnp
from jax.experimental import pallas as pl
from jax.experimental.pallas import tpu as pltpu


# ----------------------------------------------------------------------------
# Pallas kernel
# ----------------------------------------------------------------------------

def _point_prompt_kernel(x_ref, p_ref, o_ref, *, factor, n_flat):
    """x_ref (tb, N*C), p_ref (1, P*C)  ->  o_ref (tb, (N+P)*C).

    o[:, :N*C]  = x                       (bulk copy, no per-lane VPU work)
    o[:, N*C:]  = points * factor         (f32 multiply, cast, batch broadcast)
    """
    # Bulk copy of the point cloud rows.  Keep this path free of any
    # elementwise work: on v5e the single vst slot / HBM bandwidth is the
    # binding resource for this region.
    o_ref[:, :n_flat] = x_ref[...]

    # Tiny prompt tail: scale in f32, cast to the output dtype, broadcast
    # across the rows of this batch tile.
    scaled = (p_ref[...] * factor).astype(o_ref.dtype)            # (1, P*C)
    o_ref[:, n_flat:] = jnp.broadcast_to(
        scaled, (o_ref.shape[0], scaled.shape[1]))


# ----------------------------------------------------------------------------
# Wrapper
# ----------------------------------------------------------------------------

def _pick_row_block(batch, row_bytes, budget_bytes=4 * 1024 * 1024):
    """Largest batch tile that keeps blocks legal and double-buffering cheap.

    Block legality: the sublane dim must be a multiple of 8 OR equal the full
    array dim.  Budget keeps (in + out) x 2 buffers comfortably under the
    scoped-VMEM default on v5e/v6e/v7x.
    """
    if batch % 8 != 0 or batch * row_bytes <= budget_bytes:
        return batch                                  # whole batch, one block
    tb = max(8, (budget_bytes // row_bytes) // 8 * 8)
    while batch % tb != 0:                            # clean divisor -> full blocks
        tb -= 8
    return tb


def point_prompt_forward(x, points, factor):
    """x (B, N, 3), points (1, P, 3) -> (B, N+P, 3) == cat([x, points*factor], 1)."""
    B, N, C = x.shape
    _, P, Cp = points.shape
    assert C == Cp
    n_flat, p_flat = N * C, P * C
    out_flat = n_flat + p_flat

    # Flatten point/channel dims so the last (lane) axis is wide and dense.
    x2 = x.reshape(B, n_flat)
    p2 = points.reshape(1, p_flat).astype(jnp.float32)

    tb = _pick_row_block(B, out_flat * x.dtype.itemsize)
    grid = (B // tb,)

    kernel = functools.partial(
        _point_prompt_kernel, factor=float(factor), n_flat=n_flat)

    out = pl.pallas_call(
        kernel,
        out_shape=jax.ShapeDtypeStruct((B, out_flat), x.dtype),
        grid_spec=pltpu.PrefetchScalarGridSpec(
            num_scalar_prefetch=0,
            grid=grid,
            in_specs=[
                # Bulk point cloud: one batch tile per grid step (pipelined).
                pl.BlockSpec((tb, n_flat), lambda i: (i, 0)),
                # Learnable prompt: same tiny block every step (stays resident).
                pl.BlockSpec((1, p_flat), lambda i: (0, 0)),
            ],
            out_specs=pl.BlockSpec((tb, out_flat), lambda i: (i, 0)),
        ),
        compiler_params=pltpu.CompilerParams(
            # Batch tiles are independent: let v7x's two TensorCores split them.
            dimension_semantics=("parallel",),
            # Explicit, generation-safe scoped VMEM (raises v5e's 16 MiB default,
            # stays within v7x's 64 MiB physical).
            vmem_limit_bytes=32 * 1024 * 1024,
        ),
    )(x2, p2)
    return out.reshape(B, N + P, C)


# ----------------------------------------------------------------------------
# Parameter init (deterministic, default 'uniform' path of the module)
# ----------------------------------------------------------------------------

def init_point_prompt_params(key, point_number=20, scale=0.01, init_type="uniform"):
    if init_type == "uniform":
        return jax.random.uniform(
            key, (1, point_number, 3), jnp.float32, -scale, scale)
    # TODO(synk): 'cluster' init uses np.random.multivariate_normal in the
    # reference; it is a parameter-initialization detail only (does not affect
    # forward semantics), so only the default 'uniform' init is implemented.
    raise NotImplementedError(init_type)


# ----------------------------------------------------------------------------
# Main
# ----------------------------------------------------------------------------

if __name__ == "__main__":
    point_number = 20          # module default
    factor = 5.0               # module default
    scale = 0.01               # module default

    key = jax.random.PRNGKey(0)
    k_x, k_p = jax.random.split(key)

    B, N, C = 2, 128, 3        # small point cloud: (batch, points, xyz)
    x = jax.random.normal(k_x, (B, N, C), dtype=jnp.float32)
    points = init_point_prompt_params(k_p, point_number, scale)

    # Demo shape keeps the concat boundary vreg-aligned (N*C = 384 = 3*128).
    assert (N * C) % 128 == 0

    fwd = jax.jit(functools.partial(point_prompt_forward, factor=factor))
    y = fwd(x, points)
    jax.block_until_ready(y)

    # Pure-JAX reference check.
    ref = jnp.concatenate(
        [x, jnp.broadcast_to(points * factor, (B, point_number, C))], axis=1)
    assert y.shape == (B, N + point_number, C)
    assert bool(jnp.allclose(y, ref, atol=1e-6, rtol=1e-6))
    print("KERNEL_OK")
</pallas_src>

<mosaic_0001>
module attributes {stable_mosaic.version = 11 : i64} {
  func.func @_point_prompt_kernel(%arg0: i32, %arg1: memref<2x384xf32, #tpu.memory_space<vmem>>, %arg2: memref<1x60xf32, #tpu.memory_space<vmem>>, %arg3: memref<2x444xf32, #tpu.memory_space<vmem>>) attributes {dimension_semantics = [#tpu.dimension_semantics<parallel>], iteration_bounds = array<i64: 1>, scalar_prefetch = 0 : i64, scratch_operands = 0 : i64, tpu.core_type = #tpu.core_type<tc>, window_params = [{transform_indices = @transform_0, window_bounds = array<i64: 2, 384>}, {pipeline_mode = #tpu.pipeline_mode<synchronous>, transform_indices = @transform_1, window_bounds = array<i64: 1, 60>}, {transform_indices = @transform_2, window_bounds = array<i64: 2, 444>}]} {
    %c0 = arith.constant 0 : index
    %c0_0 = arith.constant 0 : index
    %0 = vector.load %arg1[%c0, %c0_0] : memref<2x384xf32, #tpu.memory_space<vmem>>, vector<2x384xf32>
    %c0_1 = arith.constant 0 : index
    %c0_2 = arith.constant 0 : index
    %1 = vector.load %arg3[%c0_1, %c0_2] : memref<2x444xf32, #tpu.memory_space<vmem>>, vector<2x384xf32>
    tpu.vector_store %arg3[%c0_1, %c0_2], %0 {strides = array<i32>} : memref<2x444xf32, #tpu.memory_space<vmem>>, vector<2x384xf32>,
    %c0_3 = arith.constant 0 : index
    %c0_4 = arith.constant 0 : index
    %2 = vector.load %arg2[%c0_3, %c0_4] : memref<1x60xf32, #tpu.memory_space<vmem>>, vector<1x60xf32>
    %cst = arith.constant 5.000000e+00 : f32
    %3 = vector.broadcast %cst : f32 to vector<1x60xf32>
    %4 = arith.mulf %2, %3 : vector<1x60xf32>
    %5 = vector.shape_cast %4 : vector<1x60xf32> to vector<1x60xf32>
    %6 = vector.broadcast %5 : vector<1x60xf32> to vector<2x60xf32>
    %c0_5 = arith.constant 0 : index
    %c384 = arith.constant 384 : index
    %7 = vector.load %arg3[%c0_5, %c384] : memref<2x444xf32, #tpu.memory_space<vmem>>, vector<2x60xf32>
    tpu.vector_store %arg3[%c0_5, %c384], %6 {strides = array<i32>} : memref<2x444xf32, #tpu.memory_space<vmem>>, vector<2x60xf32>,
    return
  }
  func.func @transform_0(%arg0: i32) -> (i32, i32) {
    %c0_i32 = arith.constant 0 : i32
    %c0_i32_0 = arith.constant 0 : i32
    return %arg0, %c0_i32 : i32, i32
  }
  func.func @transform_1(%arg0: i32) -> (i32, i32) {
    %c0_i32 = arith.constant 0 : i32
    %c0_i32_0 = arith.constant 0 : i32
    %c0_i32_1 = arith.constant 0 : i32
    return %c0_i32, %c0_i32_0 : i32, i32
  }
  func.func @transform_2(%arg0: i32) -> (i32, i32) {
    %c0_i32 = arith.constant 0 : i32
    %c0_i32_0 = arith.constant 0 : i32
    return %arg0, %c0_i32 : i32, i32
  }
}

</mosaic_0001>

<llo_original>
// kernel: point_prompt_forward.1
$region0: #{point_prompt_forward.1}
  #allocation0 [shape = 'u32[]', space=smem, size = 0x4, offset = 0x4, fixed_abs, tag = 'smem constant byte address 0x4 - core index']
  #allocation1 [shape = 'u32[144,128]{1,0:T(1,128)}', space=vmem, size = 0x12000, scoped, tag = 'internal scratch']
  %s0 = inlined_call_operand.vmem [shape: f32[2,384], index: 0, kind: input, shape index: {}]
  %s1 = inlined_call_operand.vmem [shape: f32[1,60], index: 1, kind: input, shape index: {}]
  %s2 = inlined_call_operand.vmem [shape: f32[2,444], index: 2, kind: output, shape index: {}]
  %s3 = sld [smem:[#allocation0]]
  $region18: #{point_prompt_forward.1} parent=0
    _
  %s5 = ssub.s32 1, %s3
  %s6 = scalar_select 0, %s5, %s3
  // Predicated region
  $region2: #{point_prompt_forward.1} parent=0 // pred_check
    _
  $region3: #{point_prompt_forward.1} parent=0 // pred_check_branch
    %8 = sbr.rel (0) target = $region5
  $region4: #{point_prompt_forward.1} parent=0 // pred_region
    _
  $region5: #{point_prompt_forward.1} parent=0 // pred_fallthru
    _
  // Predicated region
  $region6: #{point_prompt_forward.1} parent=0 // pred_check
    _
  $region7: #{point_prompt_forward.1} parent=0 // pred_check_branch
    %10 = sbr.rel (0) target = $region9
  $region8: #{point_prompt_forward.1} parent=0 // pred_region
    _
  $region9: #{point_prompt_forward.1} parent=0 // pred_fallthru
    _
  %v11 = vld [vmem:[%s0] sm:$0x3f]
  %12 = vst [vmem:[%s2] sm:$0x3f] %v11
  %v13 = vld [vmem:[%s1] sm:$0x1]
  %v14 = vmul.f32 %v13, 5.0
  %v16 = vlaneseq
  %v17 = vshrl.u32 %v16, 7
  %v18 = vsub.s32 0, %v17
  %v19 = vrot.slane %v14, %v18
  %vm21 = vcmask 484352
  %22 = vst.msk [vmem:[%s2 + $0x6] sm:$0x3] %vm21, %v19
  // Predicated region
  $region10: #{point_prompt_forward.1} parent=0 // pred_check
    _
  $region11: #{point_prompt_forward.1} parent=0 // pred_check_branch
    %24 = sbr.rel (0) target = $region13
  $region12: #{point_prompt_forward.1} parent=0 // pred_region
    _
  $region13: #{point_prompt_forward.1} parent=0 // pred_fallthru
    _
  // Predicated region
  $region14: #{point_prompt_forward.1} parent=0 // pred_check
    _
  $region15: #{point_prompt_forward.1} parent=0 // pred_check_branch
    %26 = sbr.rel (0) target = $region17
  $region16: #{point_prompt_forward.1} parent=0 // pred_region
    _
  $region17: #{point_prompt_forward.1} parent=0 // pred_fallthru
    _

</llo_original>
